<compile_context>
chip_gen: v7x
topology: tpu7x:2x2x1
jax: 0.10.0
libtpu: 0.0.40
codegen_flags: <defaults>
</compile_context>

<pallas_src>
import functools

import jax
import jax.numpy as jnp
from jax import lax
from jax.experimental import pallas as pl
from jax.experimental.pallas import tpu as pltpu


def _round_up(a, b):
    return (a + b - 1) // b * b


def _vmem_budget_bytes():
    """~3/4 of this generation's physical VMEM, capped at 100 MiB.

    v5e/v6e: 128 MiB physical -> ~96 MiB budget (review: raise toward ~100 MiB).
    v7x:      64 MiB physical -> ~48 MiB budget (review: stay under ~48 MiB).
    """
    try:
        cap = int(pltpu.get_tpu_info().vmem_capacity_bytes)
    except Exception:
        cap = 64 << 20  # conservative (v7x-sized) fallback
    return int(min(cap * 3 // 4, 100 << 20))


def _conv_mm_kernel(p_ref, w_ref, b_ref, o_ref):
    # p_ref: (1, M_tile, K_pad)  im2col rows for this (image, M-tile)      [streamed]
    # w_ref: (K_pad, Cout)       constant index_map -> DMA'd once; the single
    #                            stationary MXU tile (M streams through it)
    # b_ref: (1, Cout)           constant index_map -> resident
    # o_ref: (1, M_tile, Cout)   NHWC-style block; wrapper transposes back to NCHW
    #
    # One fused dot with K = kh*kw*Cin; zero-offset full blocks only (no slices,
    # no relayouts), and no reduction axis -> no accumulator scratch needed.
    acc = jnp.dot(p_ref[0], w_ref[...], preferred_element_type=jnp.float32)
    o_ref[0] = (acc + b_ref[...]).astype(o_ref.dtype)


@functools.partial(jax.jit, static_argnames=("stride", "padding", "use_bf16"))
def first_conv2d_forward(x, weight, bias, *, stride, padding, use_bf16=False):
    """y = conv2d(x, weight, bias); x is NCHW, weight is OIHW (PyTorch semantics)."""
    N, Cin, H, W = x.shape
    Cout, Cin_w, kh, kw = weight.shape
    assert Cin == Cin_w
    s, p = int(stride), int(padding)

    H_out = (H + 2 * p - kh) // s + 1
    W_out = (W + 2 * p - kw) // s + 1
    M = H_out * W_out              # output pixels per image (streamed matmul rows)
    K = kh * kw * Cin              # fully fused contraction (one dot per tile)

    k_align = 16 if use_bf16 else 8
    K_pad = _round_up(K, k_align)  # whole sublane tiles for both matmul operands

    # M tile: multiple of 128, capped so per-step VMEM stays small (v7x: 64 MiB)
    # and there are >=2 "parallel" grid steps even at N=1.
    M128 = _round_up(M, 128)
    if M128 <= 1024:
        m_tile = M128
    else:
        # least output padding, prefer the bigger tile on ties; sweep 1024-4096
        # per generation if this first conv ever dominates the profile.
        m_tile = min((2048, 1024, 512), key=lambda t: (_round_up(M, t) - M, -t))
    M_pad = _round_up(M, m_tile)

    # ------------------------- wrapper glue (XLA) -------------------------
    # im2col with both kernel rows and columns folded wrapper-side, so the Pallas
    # kernel only ever touches zero-offset full blocks.
    xp = jnp.pad(x, ((0, 0), (0, 0), (p, p), (p, p)))
    x_nhwc = jnp.transpose(xp, (0, 2, 3, 1))                  # (N, H+2p, W+2p, Cin)
    taps = []
    for ih in range(kh):
        for iw in range(kw):
            t = lax.slice(
                x_nhwc,
                (0, ih, iw, 0),
                (N, ih + s * (H_out - 1) + 1, iw + s * (W_out - 1) + 1, Cin),
                (1, s, s, 1))                                 # (N, H_out, W_out, Cin)
            taps.append(t.reshape(N, M, Cin))
    patches = jnp.concatenate(taps, axis=-1)                  # (N, M, kh*kw*Cin)
    # TODO(synk): on v5e (lowest HBM BW) an in-kernel scratch-concat of the kh tap
    # slabs would avoid this ~kh*kw/s^2 x wrapper-side input read amplification.

    if K_pad > K:
        patches = jnp.pad(patches, ((0, 0), (0, 0), (0, K_pad - K)))
    if M_pad > M:
        patches = jnp.pad(patches, ((0, 0), (0, M_pad - M), (0, 0)))

    # Weights: (Cout, Cin, kh, kw) -> (K_pad, Cout); K order (ih, iw, c) matches patches.
    w_t = jnp.transpose(weight, (2, 3, 1, 0)).reshape(K, Cout)
    if K_pad > K:
        w_t = jnp.pad(w_t, ((0, K_pad - K), (0, 0)))
    b_row = bias.reshape(1, Cout).astype(jnp.float32)

    if use_bf16:   # optional HBM/MXU saving; accumulation stays f32 in the kernel
        patches = patches.astype(jnp.bfloat16)
        w_t = w_t.astype(jnp.bfloat16)
    in_itemsize = 2 if use_bf16 else 4

    # VMEM: double-buffered streamed blocks + resident constants (lane-padded to 128).
    lane = lambda d: _round_up(d, 128)
    block_in = m_tile * lane(K_pad) * in_itemsize
    block_out = m_tile * lane(Cout) * 4
    resident = 2 * (K_pad * lane(Cout) * in_itemsize + lane(Cout) * 4)
    vmem_need = 2 * block_in + 2 * block_out + resident
    vmem_limit = int(min(max(2 * vmem_need + (4 << 20), 32 << 20), _vmem_budget_bytes()))

    cost = pl.CostEstimate(
        flops=2 * N * M_pad * K_pad * Cout,
        transcendentals=0,
        bytes_accessed=int(patches.size * in_itemsize + w_t.size * in_itemsize
                           + b_row.size * 4 + N * M_pad * Cout * 4),
    )

    out = pl.pallas_call(
        _conv_mm_kernel,
        out_shape=jax.ShapeDtypeStruct((N, M_pad, Cout), jnp.float32),
        grid=(N, M_pad // m_tile),
        in_specs=[
            pl.BlockSpec((1, m_tile, K_pad), lambda n, m: (n, m, 0)),
            pl.BlockSpec((K_pad, Cout), lambda n, m: (0, 0)),   # constant -> DMA'd once
            pl.BlockSpec((1, Cout), lambda n, m: (0, 0)),       # constant -> DMA'd once
        ],
        out_specs=pl.BlockSpec((1, m_tile, Cout), lambda n, m: (n, m, 0)),
        compiler_params=pltpu.CompilerParams(
            dimension_semantics=("parallel", "parallel"),  # batch & M tiles split across TCs
            vmem_limit_bytes=vmem_limit,
        ),
        cost_estimate=cost,
    )(patches, w_t, b_row)                                      # (N, M_pad, Cout)

    # Drop M padding and return to NCHW.  The (M, Cout) -> (Cout, M) transpose is
    # the wrapper-side cost of streaming M through a stationary weight tile
    # (review explicitly allows "an NHWC-style (M, Cout) block or a wrapper transpose").
    y = jnp.transpose(out[:, :M, :], (0, 2, 1))                 # (N, Cout, M)
    return y.reshape(N, Cout, H_out, W_out).astype(x.dtype)


# ----------------------------- FirstConv2d wrapper -----------------------------
class FirstConv2d:
    """JAX/Pallas port of retrain.FirstConv2d (QUANT_WT == False path)."""

    def __init__(self, inplanes, planes, kernel_size, stride, padding, *, key):
        self.inplanes = inplanes
        self.planes = planes
        self.kh = self.kw = int(kernel_size)
        self.stride = int(stride)
        self.padding = int(padding)

        # Deterministic init (synthetic; mimics PyTorch's uniform fan-in bound).
        k_w, k_b = jax.random.split(key)
        fan_in = inplanes * self.kh * self.kw
        bound = 1.0 / float(fan_in) ** 0.5
        # PyTorch weight layout: (Cout, Cin, KH, KW)
        self.weight = jax.random.uniform(
            k_w, (planes, inplanes, self.kh, self.kw),
            dtype=jnp.float32, minval=-bound, maxval=bound)
        self.bias = jax.random.uniform(
            k_b, (planes,), dtype=jnp.float32, minval=-bound, maxval=bound)

        # TODO(synk): the QUANT_WT==True branch (sub_quant_8/16 weight rewrite) depends
        # on torch.load'ed scale bags + a sys.argv quantile and never affects this
        # forward's output (QUANT_WT is False in the reference); not implemented.

    def __call__(self, x):
        return first_conv2d_forward(x, self.weight, self.bias,
                                    stride=self.stride, padding=self.padding,
                                    use_bf16=False)


# ----------------------------- demo / check -----------------------------
if __name__ == "__main__":
    key = jax.random.PRNGKey(0)
    k_x, k_m = jax.random.split(key)

    # Small shapes: batch=2, inplanes=4, planes=8, 16x16 spatial, 3x3 s=1 p=1.
    N, Cin, H, W = 2, 4, 16, 16
    x = jax.random.normal(k_x, (N, Cin, H, W), dtype=jnp.float32)

    mod = FirstConv2d(inplanes=Cin, planes=8, kernel_size=3, stride=1,
                      padding=1, key=k_m)

    y = jax.block_until_ready(mod(x))

    # Reference check against XLA's conv (same semantics as torch.nn.Conv2d).
    y_ref = lax.conv_general_dilated(
        x, mod.weight, window_strides=(1, 1), padding=((1, 1), (1, 1)),
        dimension_numbers=("NCHW", "OIHW", "NCHW"),
    ) + mod.bias.reshape(1, -1, 1, 1)
    assert y.shape == (N, 8, H, W)
    assert jnp.max(jnp.abs(y - y_ref)) < 1e-4

    print("KERNEL_OK")
</pallas_src>

<mosaic_0001>
module attributes {stable_mosaic.version = 11 : i64} {
  func.func @_conv_mm_kernel(%arg0: i32, %arg1: i32, %arg2: memref<1x256x40xf32, #tpu.memory_space<vmem>>, %arg3: memref<40x8xf32, #tpu.memory_space<vmem>>, %arg4: memref<1x8xf32, #tpu.memory_space<vmem>>, %arg5: memref<1x256x8xf32, #tpu.memory_space<vmem>>) attributes {dimension_semantics = [#tpu.dimension_semantics<parallel>, #tpu.dimension_semantics<parallel>], iteration_bounds = array<i64: 2, 1>, scalar_prefetch = 0 : i64, scratch_operands = 0 : i64, tpu.core_type = #tpu.core_type<tc>, window_params = [{transform_indices = @transform_0, window_bounds = array<i64: 1, 256, 40>}, {pipeline_mode = #tpu.pipeline_mode<synchronous>, transform_indices = @transform_1, window_bounds = array<i64: 40, 8>}, {pipeline_mode = #tpu.pipeline_mode<synchronous>, transform_indices = @transform_2, window_bounds = array<i64: 1, 8>}, {transform_indices = @transform_3, window_bounds = array<i64: 1, 256, 8>}]} {
    %c0 = arith.constant 0 : index
    %c0_0 = arith.constant 0 : index
    %c0_1 = arith.constant 0 : index
    %0 = vector.load %arg2[%c0, %c0_0, %c0_1] : memref<1x256x40xf32, #tpu.memory_space<vmem>>, vector<1x256x40xf32>
    %1 = vector.shape_cast %0 : vector<1x256x40xf32> to vector<256x40xf32>
    %c0_2 = arith.constant 0 : index
    %c0_3 = arith.constant 0 : index
    %2 = vector.load %arg3[%c0_2, %c0_3] : memref<40x8xf32, #tpu.memory_space<vmem>>, vector<40x8xf32>
    %cst = arith.constant dense<0.000000e+00> : vector<256x8xf32>
    %3 = tpu.matmul %1, %2, %cst {dimension_numbers = #tpu.dot_dimension_numbers<[1], [0], [0], [1], [0, 0, 1, 1], [], []>} : vector<256x40xf32>, vector<40x8xf32>, vector<256x8xf32> -> vector<256x8xf32>
    %c0_4 = arith.constant 0 : index
    %c0_5 = arith.constant 0 : index
    %4 = vector.load %arg4[%c0_4, %c0_5] : memref<1x8xf32, #tpu.memory_space<vmem>>, vector<1x8xf32>
    %5 = vector.broadcast %4 : vector<1x8xf32> to vector<256x8xf32>
    %6 = arith.addf %3, %5 : vector<256x8xf32>
    %c0_6 = arith.constant 0 : index
    %c0_7 = arith.constant 0 : index
    %c0_8 = arith.constant 0 : index
    %7 = vector.load %arg5[%c0_6, %c0_7, %c0_8] : memref<1x256x8xf32, #tpu.memory_space<vmem>>, vector<1x256x8xf32>
    %8 = vector.shape_cast %7 : vector<1x256x8xf32> to vector<256x8xf32>
    %9 = vector.shape_cast %6 : vector<256x8xf32> to vector<1x256x8xf32>
    tpu.vector_store %arg5[%c0_6, %c0_7, %c0_8], %9 {strides = array<i32>} : memref<1x256x8xf32, #tpu.memory_space<vmem>>, vector<1x256x8xf32>,
    return
  }
  func.func @transform_0(%arg0: i32, %arg1: i32) -> (i32, i32, i32) {
    %c0_i32 = arith.constant 0 : i32
    %c0_i32_0 = arith.constant 0 : i32
    return %arg0, %arg1, %c0_i32 : i32, i32, i32
  }
  func.func @transform_1(%arg0: i32, %arg1: i32) -> (i32, i32) {
    %c0_i32 = arith.constant 0 : i32
    %c0_i32_0 = arith.constant 0 : i32
    %c0_i32_1 = arith.constant 0 : i32
    return %c0_i32, %c0_i32_0 : i32, i32
  }
  func.func @transform_2(%arg0: i32, %arg1: i32) -> (i32, i32) {
    %c0_i32 = arith.constant 0 : i32
    %c0_i32_0 = arith.constant 0 : i32
    %c0_i32_1 = arith.constant 0 : i32
    return %c0_i32, %c0_i32_0 : i32, i32
  }
  func.func @transform_3(%arg0: i32, %arg1: i32) -> (i32, i32, i32) {
    %c0_i32 = arith.constant 0 : i32
    %c0_i32_0 = arith.constant 0 : i32
    return %arg0, %arg1, %c0_i32 : i32, i32, i32
  }
}

</mosaic_0001>

<llo_original>
// kernel: first_conv2d_forward.1
$region0: #{first_conv2d_forward.1}
  #allocation0 [shape = 'u32[]', space=smem, size = 0x4, offset = 0x4, fixed_abs, tag = 'smem constant byte address 0x4 - core index']
  #allocation1 [shape = 'u32[144,128]{1,0:T(1,128)}', space=vmem, size = 0x12000, scoped, tag = 'internal scratch']
  %s0 = inlined_call_operand.vmem [shape: f32[2,256,40], index: 0, kind: input, shape index: {}]
  %s1 = inlined_call_operand.vmem [shape: f32[40,8], index: 1, kind: input, shape index: {}]
  %s2 = inlined_call_operand.vmem [shape: f32[1,8], index: 2, kind: input, shape index: {}]
  %s3 = inlined_call_operand.vmem [shape: f32[2,256,8], index: 3, kind: output, shape index: {}]
  %s4 = sld [smem:[#allocation0]]
  $region45: #{first_conv2d_forward.1} parent=0
    _
  %s6 = ssub.s32 1, %s4
  %s7 = scalar_select 0, %s6, %s4
  loop: start=0, step=1, limit=4
  $region2: #{first_conv2d_forward.1} parent=0 // loop_pre_header
    _
  $region3: #{first_conv2d_forward.1} parent=0 // loop_header
    %s9 = sphi 0, %s13
    %p10 = scmp.ge.s32.totalorder %s9, 4
    %s16 = sphi 0, %s28
    %s17 = sphi 0, %s24
    %s18 = sphi 0, %s16
    %s19 = sphi 0, %s17
    %s20 = sphi 0, %s18
    %s21 = sphi 0, %s19
    %s33 = sphi 0, %s35
    %s36 = sphi 0, %s33
    %s37 = sphi 0, %s36
    %s53 = sphi 0, %s37
    %s57 = sphi 0, %s57
    %s59 = sphi 0, %s57
    %s60 = sphi 0, %s59
    %s74 = sphi 0, %s60
    %s78 = sphi 0, %s78
    %s80 = sphi 0, %s78
    %s81 = sphi 0, %s80
    %s95 = sphi 0, %s81
    %s103 = sphi 0, %s105
    %s106 = sphi 0, %s103
    %s107 = sphi 0, %s106
    %s123 = sphi 0, %s107
  $region4: #{first_conv2d_forward.1} parent=0 // loop_header_branch
    %12 = sbr.rel (%p10) target = $region8
  $region5: #{first_conv2d_forward.1} parent=0 // loop_body
    %s14 = ssub.s32 %s9, 1
    %s15 = ssub.s32 %s9, 2
    %s22 = sadd.s32 1, %s17
    %p23 = scmp.ge.s32.totalorder %s22, 1
    %s24 = scalar_select %p23, 0, %s22
    %s25 = sadd.s32 1, %s16
    %s26 = scalar_select %p23, %s25, %s16
    %p27 = scmp.ge.s32.totalorder %s26, 2
    %s28 = scalar_select %p27, 0, %s26
    %s29 = ssub.s32 %s16, %s28
    %s30 = ssub.s32 %s17, %s24
    %s31 = sor.u32 %s29, %s30
    %p32 = scmp.eq.s32.totalorder %s31, 0
    %s34 = sadd.s32 %s33, 1
    %s35 = scalar_select %p32, %s33, %s34
    %p38 = pneg %p32
    %p39 = scmp.eq.s32.totalorder %s9, 1
    %p40 = por %p38, %p39
    %p41 = scmp.ne.s32.totalorder %s33, %s36
    %p42 = scmp.eq.s32.totalorder %s9, 0
    %p43 = por %p41, %p42
    %p44 = scmp.ne.s32.totalorder %s33, %s36
    %p45 = scmp.eq.s32.totalorder %s14, 1
    %p46 = por %p44, %p45
    %p47 = scmp.ne.s32.totalorder %s36, %s37
    %p48 = scmp.eq.s32.totalorder %s14, 0
    %p49 = por %p47, %p48
    %p50 = scmp.ne.s32.totalorder %s36, %s37
    %p51 = scmp.eq.s32.totalorder %s15, 1
    %p52 = por %p50, %p51
    %p54 = scmp.ne.s32.totalorder %s37, %s53
    %p55 = scmp.eq.s32.totalorder %s15, 0
    %p56 = por %p54, %p55
    %s58 = sadd.s32 %s57, 1
    %p61 = scmp.eq.s32.totalorder %s9, 1
    %p62 = scmp.ne.s32.totalorder %s57, %s59
    %p63 = scmp.eq.s32.totalorder %s9, 0
    %p64 = por %p62, %p63
    %p65 = scmp.ne.s32.totalorder %s57, %s59
    %p66 = scmp.eq.s32.totalorder %s14, 1
    %p67 = por %p65, %p66
    %p68 = scmp.ne.s32.totalorder %s59, %s60
    %p69 = scmp.eq.s32.totalorder %s14, 0
    %p70 = por %p68, %p69
    %p71 = scmp.ne.s32.totalorder %s59, %s60
    %p72 = scmp.eq.s32.totalorder %s15, 1
    %p73 = por %p71, %p72
    %p75 = scmp.ne.s32.totalorder %s60, %s74
    %p76 = scmp.eq.s32.totalorder %s15, 0
    %p77 = por %p75, %p76
    %s79 = sadd.s32 %s78, 1
    %p82 = scmp.eq.s32.totalorder %s9, 1
    %p83 = scmp.ne.s32.totalorder %s78, %s80
    %p84 = scmp.eq.s32.totalorder %s9, 0
    %p85 = por %p83, %p84
    %p86 = scmp.ne.s32.totalorder %s78, %s80
    %p87 = scmp.eq.s32.totalorder %s14, 1
    %p88 = por %p86, %p87
    %p89 = scmp.ne.s32.totalorder %s80, %s81
    %p90 = scmp.eq.s32.totalorder %s14, 0
    %p91 = por %p89, %p90
    %p92 = scmp.ne.s32.totalorder %s80, %s81
    %p93 = scmp.eq.s32.totalorder %s15, 1
    %p94 = por %p92, %p93
    %p96 = scmp.ne.s32.totalorder %s81, %s95
    %p97 = scmp.eq.s32.totalorder %s15, 0
    %p98 = por %p96, %p97
    %s99 = ssub.s32 %s16, %s28
    %s100 = ssub.s32 %s17, %s24
    %s101 = sor.u32 %s99, %s100
    %p102 = scmp.eq.s32.totalorder %s101, 0
    %s104 = sadd.s32 %s103, 1
    %s105 = scalar_select %p102, %s103, %s104
    %p108 = pneg %p102
    %p109 = scmp.eq.s32.totalorder %s9, 1
    %p110 = por %p108, %p109
    %p111 = scmp.ne.s32.totalorder %s103, %s106
    %p112 = scmp.eq.s32.totalorder %s9, 0
    %p113 = por %p111, %p112
    %p114 = scmp.ne.s32.totalorder %s103, %s106
    %p115 = scmp.eq.s32.totalorder %s14, 1
    %p116 = por %p114, %p115
    %p117 = scmp.ne.s32.totalorder %s106, %s107
    %p118 = scmp.eq.s32.totalorder %s14, 0
    %p119 = por %p117, %p118
    %p120 = scmp.ne.s32.totalorder %s106, %s107
    %p121 = scmp.eq.s32.totalorder %s15, 1
    %p122 = por %p120, %p121
    %p124 = scmp.ne.s32.totalorder %s107, %s123
    %p125 = scmp.eq.s32.totalorder %s15, 0
    %p126 = por %p124, %p125
    %p127 = scmp.le.s32.totalorder 1, %s9
    %p128 = scmp.lt.s32.totalorder %s9, 3
    %p129 = pnand %p127, %p128
    %p130 = pneg %p129
    // Predicated region
    $region9: #{first_conv2d_forward.1} parent=5 // pred_check
      _
    $region10: #{first_conv2d_forward.1} parent=5 // pred_check_branch
      %132 = sbr.rel (%p129) target = $region12
    $region11: #{first_conv2d_forward.1} parent=5 // pred_region
      %s133 = ssub.s32 %s9, 1
      // Predicated region
      $region13: #{first_conv2d_forward.1} parent=11 // pred_check
        %p134 = pneg %p70
      $region14: #{first_conv2d_forward.1} parent=11 // pred_check_branch
        %136 = sbr.rel (%p134) target = $region16
      $region15: #{first_conv2d_forward.1} parent=11 // pred_region
        _
      $region16: #{first_conv2d_forward.1} parent=11 // pred_fallthru
        _
      // Predicated region
      $region17: #{first_conv2d_forward.1} parent=11 // pred_check
        %p137 = pneg %p91
      $region18: #{first_conv2d_forward.1} parent=11 // pred_check_branch
        %139 = sbr.rel (%p137) target = $region20
      $region19: #{first_conv2d_forward.1} parent=11 // pred_region
        _
      $region20: #{first_conv2d_forward.1} parent=11 // pred_fallthru
        _
    $region12: #{first_conv2d_forward.1} parent=5 // pred_fallthru
      _
    %p140 = scmp.lt.s32.totalorder %s9, 2
    // Predicated region
    $region21: #{first_conv2d_forward.1} parent=5 // pred_check
      %p141 = pneg %p140
    $region22: #{first_conv2d_forward.1} parent=5 // pred_check_branch
      %143 = sbr.rel (%p141) target = $region24
    $region23: #{first_conv2d_forward.1} parent=5 // pred_region
      // Predicated region
      $region25: #{first_conv2d_forward.1} parent=23 // pred_check
        %p144 = pneg %p43
      $region26: #{first_conv2d_forward.1} parent=23 // pred_check_branch
        %146 = sbr.rel (%p144) target = $region28
      $region27: #{first_conv2d_forward.1} parent=23 // pred_region
        %s147 = smul.u32 32, %s17
        %p148 = scmp.lt.s32.totalorder %s16, 1
        %s149 = scalar_select %p148, %s16, 1
        %p150 = scmp.lt.s32.totalorder %s147, 31
        %s151 = scalar_select %p150, %s147, 31
        %s152 = smul.addr %s149, 32
        %s153 = sadd.s32 %s151, %s152
        %s154 = smul.addr %s153, 8
        %s155 = scalar_lea.vmem %s0, %s154
        %s156 = smul.u32 32, %s17
      $region28: #{first_conv2d_forward.1} parent=23 // pred_fallthru
        _
    $region24: #{first_conv2d_forward.1} parent=5 // pred_fallthru
      _
    %p157 = scmp.le.s32.totalorder 1, %s9
    %p158 = scmp.lt.s32.totalorder %s9, 3
    %p159 = pnand %p157, %p158
    %p160 = pneg %p159
    // Predicated region
    $region29: #{first_conv2d_forward.1} parent=5 // pred_check
      _
    $region30: #{first_conv2d_forward.1} parent=5 // pred_check_branch
      %162 = sbr.rel (%p159) target = $region32
    $region31: #{first_conv2d_forward.1} parent=5 // pred_region
      %s163 = ssub.s32 %s9, 1
      %s164 = smul.u32 32, %s19
      %p165 = scmp.lt.s32.totalorder %s18, 1
      %s166 = scalar_select %p165, %s18, 1
      %p167 = scmp.lt.s32.totalorder %s164, 31
      %s168 = scalar_select %p167, %s164, 31
      %s169 = smul.addr %s166, 32
      %s170 = sadd.s32 %s168, %s169
      %s171 = smul.addr %s170, 8
      %s172 = scalar_lea.vmem %s0, %s171
      %p173 = pneg %p49
      %p174 = pneg %p46
      %p175 = pneg %p70
      %p176 = pneg %p67
      %p177 = pneg %p91
      %p178 = pneg %p88
      %p179 = pneg %p119
      %p180 = pneg %p116
      %s181 = smul.u32 32, %s19
      %p182 = scmp.lt.s32.totalorder %s18, 1
      %s183 = scalar_select %p182, %s18, 1
      %p184 = scmp.lt.s32.totalorder %s181, 31
      %s185 = scalar_select %p184, %s181, 31
      %s186 = smul.addr %s183, 32
      %s187 = sadd.s32 %s185, %s186
      %s188 = smul.addr %s187, 8
      %s189 = scalar_lea.vmem %s3, %s188
      %s190 = smul.u32 32, %s19
      %p191 = scmp.lt.s32.totalorder %s18, 1
      %s192 = scalar_select %p191, %s18, 1
      %p193 = scmp.lt.s32.totalorder %s190, 31
      %s194 = scalar_select %p193, %s190, 31
      %s195 = smul.addr %s192, 32
      %s196 = sadd.s32 %s194, %s195
      %s197 = smul.addr %s196, 8
      %s198 = scalar_lea.vmem %s0, %s197
      %s199 = smul.u32 32, %s19
      %s200 = smul.u32 32, %s19
      %p201 = scmp.lt.s32.totalorder %s18, 1
      %s202 = scalar_select %p201, %s18, 1
      %p203 = scmp.lt.s32.totalorder %s200, 31
      %s204 = scalar_select %p203, %s200, 31
      %s205 = smul.addr %s202, 32
      %s206 = sadd.s32 %s204, %s205
      %s207 = smul.addr %s206, 8
      %s208 = scalar_lea.vmem %s3, %s207
      %s209 = smul.u32 32, %s19
      %v210 = vld [vmem:[%s198] sm:$0xff]
      %v211 = vld [vmem:[%s198 + $0x8] sm:$0xff]
      %v212 = vld [vmem:[%s198 + $0x10] sm:$0xff]
      %v213 = vld [vmem:[%s198 + $0x18] sm:$0xff]
      %v214 = vld [vmem:[%s198 + $0x20] sm:$0xff]
      %v215 = vld [vmem:[%s198 + $0x28] sm:$0xff]
      %v216 = vld [vmem:[%s198 + $0x30] sm:$0xff]
      %v217 = vld [vmem:[%s198 + $0x38] sm:$0xff]
      %v218 = vld [vmem:[%s198 + $0x40] sm:$0xff]
      %v219 = vld [vmem:[%s198 + $0x48] sm:$0xff]
      %v220 = vld [vmem:[%s198 + $0x50] sm:$0xff]
      %v221 = vld [vmem:[%s198 + $0x58] sm:$0xff]
      %v222 = vld [vmem:[%s198 + $0x60] sm:$0xff]
      %v223 = vld [vmem:[%s198 + $0x68] sm:$0xff]
      %v224 = vld [vmem:[%s198 + $0x70] sm:$0xff]
      %v225 = vld [vmem:[%s198 + $0x78] sm:$0xff]
      %v226 = vld [vmem:[%s198 + $0x80] sm:$0xff]
      %v227 = vld [vmem:[%s198 + $0x88] sm:$0xff]
      %v228 = vld [vmem:[%s198 + $0x90] sm:$0xff]
      %v229 = vld [vmem:[%s198 + $0x98] sm:$0xff]
      %v230 = vld [vmem:[%s198 + $0xa0] sm:$0xff]
      %v231 = vld [vmem:[%s198 + $0xa8] sm:$0xff]
      %v232 = vld [vmem:[%s198 + $0xb0] sm:$0xff]
      %v233 = vld [vmem:[%s198 + $0xb8] sm:$0xff]
      %v234 = vld [vmem:[%s198 + $0xc0] sm:$0xff]
      %v235 = vld [vmem:[%s198 + $0xc8] sm:$0xff]
      %v236 = vld [vmem:[%s198 + $0xd0] sm:$0xff]
      %v237 = vld [vmem:[%s198 + $0xd8] sm:$0xff]
      %v238 = vld [vmem:[%s198 + $0xe0] sm:$0xff]
      %v239 = vld [vmem:[%s198 + $0xe8] sm:$0xff]
      %v240 = vld [vmem:[%s198 + $0xf0] sm:$0xff]
      %v241 = vld [vmem:[%s198 + $0xf8] sm:$0xff]
      %v242 = vld [vmem:[%s1] sm:$0xff]
      %v243 = vld [vmem:[%s1 + $0x8] sm:$0xff]
      %v244 = vld [vmem:[%s1 + $0x10] sm:$0xff]
      %v245 = vld [vmem:[%s1 + $0x18] sm:$0xff]
      %v246 = vld [vmem:[%s1 + $0x20] sm:$0xff]
      %v247 = vld [vmem:[%s2] sm:$0x1]
      %v249 = vlaneseq
      %v250 = vshrl.u32 %v249, 7
      %v251 = vsub.s32 0, %v250
      %v252 = vrot.slane %v247, %v251
      %vm254 = vcmask 326656
      %v256 = vsel %vm254, %v210, 0
      %v259 = vsel %vm254, %v211, 0
      %v262 = vsel %vm254, %v212, 0
      %v265 = vsel %vm254, %v213, 0
      %v268 = vsel %vm254, %v214, 0
      %v271 = vsel %vm254, %v215, 0
      %v274 = vsel %vm254, %v216, 0
      %v277 = vsel %vm254, %v217, 0
      %v280 = vsel %vm254, %v218, 0
      %v283 = vsel %vm254, %v219, 0
      %v286 = vsel %vm254, %v220, 0
      %v289 = vsel %vm254, %v221, 0
      %v292 = vsel %vm254, %v222, 0
      %v295 = vsel %vm254, %v223, 0
      %v298 = vsel %vm254, %v224, 0
      %v301 = vsel %vm254, %v225, 0
      %v304 = vsel %vm254, %v226, 0
      %v307 = vsel %vm254, %v227, 0
      %v310 = vsel %vm254, %v228, 0
      %v313 = vsel %vm254, %v229, 0
      %v316 = vsel %vm254, %v230, 0
      %v319 = vsel %vm254, %v231, 0
      %v322 = vsel %vm254, %v232, 0
      %v325 = vsel %vm254, %v233, 0
      %v328 = vsel %vm254, %v234, 0
      %v331 = vsel %vm254, %v235, 0
      %v334 = vsel %vm254, %v236, 0
      %v337 = vsel %vm254, %v237, 0
      %v340 = vsel %vm254, %v238, 0
      %v343 = vsel %vm254, %v239, 0
      %v346 = vsel %vm254, %v240, 0
      %v349 = vsel %vm254, %v241, 0
      %351 = vmatprep.subr.mxu0 0.0
      %352 = vmatpush1.msra.mxu0 %v242
      %353 = vmatprep.subr.mxu0 0.0
      %354 = vmatpush1.msra.mxu0 %v243
      %355 = vmatprep.subr.mxu0 0.0
      %356 = vmatpush1.msra.mxu0 %v244
      %357 = vmatprep.subr.mxu0 0.0
      %358 = vmatpush1.msra.mxu0 %v245
      %359 = vmatprep.subr.mxu0 0.0
      %360 = vmatpush1.msra.mxu0 %v246
      %361 = vmatprep.subr.mxu0 0.0
      %362 = vmatpush1.msra.mxu0 0.0
      %363 = vmatprep.subr.mxu0 0.0
      %364 = vmatpush1.msra.mxu0 0.0
      %365 = vmatprep.subr.mxu0 0.0
      %366 = vmatpush1.msra.mxu0 0.0
      %367 = vmatprep.subr.mxu0 0.0
      %368 = vmatpush1.msra.mxu0 0.0
      %369 = vmatprep.subr.mxu0 0.0
      %370 = vmatpush1.msra.mxu0 0.0
      %371 = vmatprep.subr.mxu0 0.0
      %372 = vmatpush1.msra.mxu0 0.0
      %373 = vmatprep.subr.mxu0 0.0
      %374 = vmatpush1.msra.mxu0 0.0
      %375 = vmatprep.subr.mxu0 0.0
      %376 = vmatpush1.msra.mxu0 0.0
      %377 = vmatprep.subr.mxu0 0.0
      %378 = vmatpush1.msra.mxu0 0.0
      %379 = vmatprep.subr.mxu0 0.0
      %380 = vmatpush1.msra.mxu0 0.0
      %381 = vmatprep.subr.mxu0 0.0
      %382 = vmatpush1.msra.mxu0 0.0
      %383 = vmatprep.subr.mxu0 0.0
      %384 = vmatpush1.msra.mxu0 0.0
      %385 = vmatprep.subr.mxu0 0.0
      %386 = vmatpush1.msra.mxu0 0.0
      %387 = vmatprep.subr.mxu0 0.0
      %388 = vmatpush1.msra.mxu0 0.0
      %389 = vmatprep.subr.mxu0 0.0
      %390 = vmatpush1.msra.mxu0 0.0
      %391 = vmatprep.subr.mxu0 0.0
      %392 = vmatpush1.msra.mxu0 0.0
      %393 = vmatprep.subr.mxu0 0.0
      %394 = vmatpush1.msra.mxu0 0.0
      %395 = vmatprep.subr.mxu0 0.0
      %396 = vmatpush1.msra.mxu0 0.0
      %397 = vmatprep.subr.mxu0 0.0
      %398 = vmatpush1.msra.mxu0 0.0
      %399 = vmatprep.subr.mxu0 0.0
      %400 = vmatpush1.msra.mxu0 0.0
      %401 = vmatprep.subr.mxu0 0.0
      %402 = vmatpush1.msra.mxu0 0.0
      %403 = vmatprep.subr.mxu0 0.0
      %404 = vmatpush1.msra.mxu0 0.0
      %405 = vmatprep.subr.mxu0 0.0
      %406 = vmatpush1.msra.mxu0 0.0
      %407 = vmatprep.subr.mxu0 0.0
      %408 = vmatpush1.msra.mxu0 0.0
      %409 = vmatprep.subr.mxu0 0.0
      %410 = vmatpush1.msra.mxu0 0.0
      %411 = vmatprep.subr.mxu0 0.0
      %412 = vmatpush1.msra.mxu0 0.0
      %413 = vmatprep.subr.mxu0 0.0
      %414 = vmatpush1.msra.mxu0 0.0
      %415 = vmatprep.mubr.f32.mxu0 0.0
      %416 = vmatmul.mubr.f32.gmra.mrb[0].mxu0 %v256
      %v417 = vpop.f32.mrb[0].mxu0
      %v418 = vadd.f32 %v252, %v417
      %v419 = vpop.f32.mrb[0].mxu0
      %420 = vmatprep.mubr.f32.mxu0 0.0
      %421 = vmatmul.mubr.f32.gmra.mrb[0].mxu0 %v259
      %v422 = vpop.f32.mrb[0].mxu0
      %v423 = vadd.f32 %v252, %v422
      %v424 = vpop.f32.mrb[0].mxu0
      %425 = vmatprep.mubr.f32.mxu0 0.0
      %426 = vmatmul.mubr.f32.gmra.mrb[0].mxu0 %v262
      %v427 = vpop.f32.mrb[0].mxu0
      %v428 = vadd.f32 %v252, %v427
      %v429 = vpop.f32.mrb[0].mxu0
      %430 = vmatprep.mubr.f32.mxu0 0.0
      %431 = vmatmul.mubr.f32.gmra.mrb[0].mxu0 %v265
      %v432 = vpop.f32.mrb[0].mxu0
      %v433 = vadd.f32 %v252, %v432
      %v434 = vpop.f32.mrb[0].mxu0
      %435 = vmatprep.mubr.f32.mxu0 0.0
      %436 = vmatmul.mubr.f32.gmra.mrb[0].mxu0 %v268
      %v437 = vpop.f32.mrb[0].mxu0
      %v438 = vadd.f32 %v252, %v437
      %v439 = vpop.f32.mrb[0].mxu0
      %440 = vmatprep.mubr.f32.mxu0 0.0
      %441 = vmatmul.mubr.f32.gmra.mrb[0].mxu0 %v271
      %v442 = vpop.f32.mrb[0].mxu0
      %v443 = vadd.f32 %v252, %v442
      %v444 = vpop.f32.mrb[0].mxu0
      %445 = vmatprep.mubr.f32.mxu0 0.0
      %446 = vmatmul.mubr.f32.gmra.mrb[0].mxu0 %v274
      %v447 = vpop.f32.mrb[0].mxu0
      %v448 = vadd.f32 %v252, %v447
      %v449 = vpop.f32.mrb[0].mxu0
      %450 = vmatprep.mubr.f32.mxu0 0.0
      %451 = vmatmul.mubr.f32.gmra.mrb[0].mxu0 %v277
      %v452 = vpop.f32.mrb[0].mxu0
      %v453 = vadd.f32 %v252, %v452
      %v454 = vpop.f32.mrb[0].mxu0
      %455 = vmatprep.mubr.f32.mxu0 0.0
      %456 = vmatmul.mubr.f32.gmra.mrb[0].mxu0 %v280
      %v457 = vpop.f32.mrb[0].mxu0
      %v458 = vadd.f32 %v252, %v457
      %v459 = vpop.f32.mrb[0].mxu0
      %460 = vmatprep.mubr.f32.mxu0 0.0
      %461 = vmatmul.mubr.f32.gmra.mrb[0].mxu0 %v283
      %v462 = vpop.f32.mrb[0].mxu0
      %v463 = vadd.f32 %v252, %v462
      %v464 = vpop.f32.mrb[0].mxu0
      %465 = vmatprep.mubr.f32.mxu0 0.0
      %466 = vmatmul.mubr.f32.gmra.mrb[0].mxu0 %v286
      %v467 = vpop.f32.mrb[0].mxu0
      %v468 = vadd.f32 %v252, %v467
      %v469 = vpop.f32.mrb[0].mxu0
      %470 = vmatprep.mubr.f32.mxu0 0.0
      %471 = vmatmul.mubr.f32.gmra.mrb[0].mxu0 %v289
      %v472 = vpop.f32.mrb[0].mxu0
      %v473 = vadd.f32 %v252, %v472
      %v474 = vpop.f32.mrb[0].mxu0
      %475 = vmatprep.mubr.f32.mxu0 0.0
      %476 = vmatmul.mubr.f32.gmra.mrb[0].mxu0 %v292
      %v477 = vpop.f32.mrb[0].mxu0
      %v478 = vadd.f32 %v252, %v477
      %v479 = vpop.f32.mrb[0].mxu0
      %480 = vmatprep.mubr.f32.mxu0 0.0
      %481 = vmatmul.mubr.f32.gmra.mrb[0].mxu0 %v295
      %v482 = vpop.f32.mrb[0].mxu0
      %v483 = vadd.f32 %v252, %v482
      %v484 = vpop.f32.mrb[0].mxu0
      %485 = vmatprep.mubr.f32.mxu0 0.0
      %486 = vmatmul.mubr.f32.gmra.mrb[0].mxu0 %v298
      %v487 = vpop.f32.mrb[0].mxu0
      %v488 = vadd.f32 %v252, %v487
      %v489 = vpop.f32.mrb[0].mxu0
      %490 = vmatprep.mubr.f32.mxu0 0.0
      %491 = vmatmul.mubr.f32.gmra.mrb[0].mxu0 %v301
      %v492 = vpop.f32.mrb[0].mxu0
      %v493 = vadd.f32 %v252, %v492
      %v494 = vpop.f32.mrb[0].mxu0
      %495 = vmatprep.mubr.f32.mxu0 0.0
      %496 = vmatmul.mubr.f32.gmra.mrb[0].mxu0 %v304
      %v497 = vpop.f32.mrb[0].mxu0
      %v498 = vadd.f32 %v252, %v497
      %v499 = vpop.f32.mrb[0].mxu0
      %500 = vmatprep.mubr.f32.mxu0 0.0
      %501 = vmatmul.mubr.f32.gmra.mrb[0].mxu0 %v307
      %v502 = vpop.f32.mrb[0].mxu0
      %v503 = vadd.f32 %v252, %v502
      %v504 = vpop.f32.mrb[0].mxu0
      %505 = vmatprep.mubr.f32.mxu0 0.0
      %506 = vmatmul.mubr.f32.gmra.mrb[0].mxu0 %v310
      %v507 = vpop.f32.mrb[0].mxu0
      %v508 = vadd.f32 %v252, %v507
      %v509 = vpop.f32.mrb[0].mxu0
      %510 = vmatprep.mubr.f32.mxu0 0.0
      %511 = vmatmul.mubr.f32.gmra.mrb[0].mxu0 %v313
      %v512 = vpop.f32.mrb[0].mxu0
      %v513 = vadd.f32 %v252, %v512
      %v514 = vpop.f32.mrb[0].mxu0
      %515 = vmatprep.mubr.f32.mxu0 0.0
      %516 = vmatmul.mubr.f32.gmra.mrb[0].mxu0 %v316
      %v517 = vpop.f32.mrb[0].mxu0
      %v518 = vadd.f32 %v252, %v517
      %v519 = vpop.f32.mrb[0].mxu0
      %520 = vmatprep.mubr.f32.mxu0 0.0
      %521 = vmatmul.mubr.f32.gmra.mrb[0].mxu0 %v319
      %v522 = vpop.f32.mrb[0].mxu0
      %v523 = vadd.f32 %v252, %v522
      %v524 = vpop.f32.mrb[0].mxu0
      %525 = vmatprep.mubr.f32.mxu0 0.0
      %526 = vmatmul.mubr.f32.gmra.mrb[0].mxu0 %v322
      %v527 = vpop.f32.mrb[0].mxu0
      %v528 = vadd.f32 %v252, %v527
      %v529 = vpop.f32.mrb[0].mxu0
      %530 = vmatprep.mubr.f32.mxu0 0.0
      %531 = vmatmul.mubr.f32.gmra.mrb[0].mxu0 %v325
      %v532 = vpop.f32.mrb[0].mxu0
      %v533 = vadd.f32 %v252, %v532
      %v534 = vpop.f32.mrb[0].mxu0
      %535 = vmatprep.mubr.f32.mxu0 0.0
      %536 = vmatmul.mubr.f32.gmra.mrb[0].mxu0 %v328
      %v537 = vpop.f32.mrb[0].mxu0
      %v538 = vadd.f32 %v252, %v537
      %v539 = vpop.f32.mrb[0].mxu0
      %540 = vmatprep.mubr.f32.mxu0 0.0
      %541 = vmatmul.mubr.f32.gmra.mrb[0].mxu0 %v331
      %v542 = vpop.f32.mrb[0].mxu0
      %v543 = vadd.f32 %v252, %v542
      %v544 = vpop.f32.mrb[0].mxu0
      %545 = vmatprep.mubr.f32.mxu0 0.0
      %546 = vmatmul.mubr.f32.gmra.mrb[0].mxu0 %v334
      %v547 = vpop.f32.mrb[0].mxu0
      %v548 = vadd.f32 %v252, %v547
      %v549 = vpop.f32.mrb[0].mxu0
      %550 = vmatprep.mubr.f32.mxu0 0.0
      %551 = vmatmul.mubr.f32.gmra.mrb[0].mxu0 %v337
      %v552 = vpop.f32.mrb[0].mxu0
      %v553 = vadd.f32 %v252, %v552
      %v554 = vpop.f32.mrb[0].mxu0
      %555 = vmatprep.mubr.f32.mxu0 0.0
      %556 = vmatmul.mubr.f32.gmra.mrb[0].mxu0 %v340
      %v557 = vpop.f32.mrb[0].mxu0
      %v558 = vadd.f32 %v252, %v557
      %v559 = vpop.f32.mrb[0].mxu0
      %560 = vmatprep.mubr.f32.mxu0 0.0
      %561 = vmatmul.mubr.f32.gmra.mrb[0].mxu0 %v343
      %v562 = vpop.f32.mrb[0].mxu0
      %v563 = vadd.f32 %v252, %v562
      %v564 = vpop.f32.mrb[0].mxu0
      %565 = vmatprep.mubr.f32.mxu0 0.0
      %566 = vmatmul.mubr.f32.gmra.mrb[0].mxu0 %v346
      %v567 = vpop.f32.mrb[0].mxu0
      %v568 = vadd.f32 %v252, %v567
      %v569 = vpop.f32.mrb[0].mxu0
      %570 = vmatprep.mubr.f32.mxu0 0.0
      %571 = vmatmul.mubr.f32.gmra.mrb[0].mxu0 %v349
      %v572 = vpop.f32.mrb[0].mxu0
      %v573 = vadd.f32 %v252, %v572
      %v574 = vpop.f32.mrb[0].mxu0
      %575 = vdwg.mxu0
      %vm576 = vcmask 64512
      %577 = vst.msk [vmem:[%s208] sm:$0xff] %vm576, %v418
      %578 = vst.msk [vmem:[%s208 + $0x8] sm:$0xff] %vm576, %v423
      %579 = vst.msk [vmem:[%s208 + $0x10] sm:$0xff] %vm576, %v428
      %580 = vst.msk [vmem:[%s208 + $0x18] sm:$0xff] %vm576, %v433
      %581 = vst.msk [vmem:[%s208 + $0x20] sm:$0xff] %vm576, %v438
      %582 = vst.msk [vmem:[%s208 + $0x28] sm:$0xff] %vm576, %v443
      %583 = vst.msk [vmem:[%s208 + $0x30] sm:$0xff] %vm576, %v448
      %584 = vst.msk [vmem:[%s208 + $0x38] sm:$0xff] %vm576, %v453
      %585 = vst.msk [vmem:[%s208 + $0x40] sm:$0xff] %vm576, %v458
      %586 = vst.msk [vmem:[%s208 + $0x48] sm:$0xff] %vm576, %v463
      %587 = vst.msk [vmem:[%s208 + $0x50] sm:$0xff] %vm576, %v468
      %588 = vst.msk [vmem:[%s208 + $0x58] sm:$0xff] %vm576, %v473
      %589 = vst.msk [vmem:[%s208 + $0x60] sm:$0xff] %vm576, %v478
      %590 = vst.msk [vmem:[%s208 + $0x68] sm:$0xff] %vm576, %v483
      %591 = vst.msk [vmem:[%s208 + $0x70] sm:$0xff] %vm576, %v488
      %592 = vst.msk [vmem:[%s208 + $0x78] sm:$0xff] %vm576, %v493
      %593 = vst.msk [vmem:[%s208 + $0x80] sm:$0xff] %vm576, %v498
      %594 = vst.msk [vmem:[%s208 + $0x88] sm:$0xff] %vm576, %v503
      %595 = vst.msk [vmem:[%s208 + $0x90] sm:$0xff] %vm576, %v508
      %596 = vst.msk [vmem:[%s208 + $0x98] sm:$0xff] %vm576, %v513
      %597 = vst.msk [vmem:[%s208 + $0xa0] sm:$0xff] %vm576, %v518
      %598 = vst.msk [vmem:[%s208 + $0xa8] sm:$0xff] %vm576, %v523
      %599 = vst.msk [vmem:[%s208 + $0xb0] sm:$0xff] %vm576, %v528
      %600 = vst.msk [vmem:[%s208 + $0xb8] sm:$0xff] %vm576, %v533
      %601 = vst.msk [vmem:[%s208 + $0xc0] sm:$0xff] %vm576, %v538
      %602 = vst.msk [vmem:[%s208 + $0xc8] sm:$0xff] %vm576, %v543
      %603 = vst.msk [vmem:[%s208 + $0xd0] sm:$0xff] %vm576, %v548
      %604 = vst.msk [vmem:[%s208 + $0xd8] sm:$0xff] %vm576, %v553
      %605 = vst.msk [vmem:[%s208 + $0xe0] sm:$0xff] %vm576, %v558
      %606 = vst.msk [vmem:[%s208 + $0xe8] sm:$0xff] %vm576, %v563
      %607 = vst.msk [vmem:[%s208 + $0xf0] sm:$0xff] %vm576, %v568
      %608 = vst.msk [vmem:[%s208 + $0xf8] sm:$0xff] %vm576, %v573
      %s609 = smul.u32 32, %s19
      %p610 = scmp.lt.s32.totalorder %s18, 1
      %s611 = scalar_select %p610, %s18, 1
      %p612 = scmp.lt.s32.totalorder %s609, 31
      %s613 = scalar_select %p612, %s609, 31
      %s614 = smul.addr %s611, 32
      %s615 = sadd.s32 %s613, %s614
      %s616 = smul.addr %s615, 8
      %s617 = scalar_lea.vmem %s3, %s616
      // Predicated region
      $region33: #{first_conv2d_forward.1} parent=31 // pred_check
        %p618 = pneg %p116
      $region34: #{first_conv2d_forward.1} parent=31 // pred_check_branch
        %620 = sbr.rel (%p618) target = $region36
      $region35: #{first_conv2d_forward.1} parent=31 // pred_region
        %s621 = smul.u32 32, %s19
      $region36: #{first_conv2d_forward.1} parent=31 // pred_fallthru
        _
    $region32: #{first_conv2d_forward.1} parent=5 // pred_fallthru
      _
    %p622 = scmp.le.s32.totalorder 2, %s9
    // Predicated region
    $region37: #{first_conv2d_forward.1} parent=5 // pred_check
      %p623 = pneg %p622
    $region38: #{first_conv2d_forward.1} parent=5 // pred_check_branch
      %625 = sbr.rel (%p623) target = $region40
    $region39: #{first_conv2d_forward.1} parent=5 // pred_region
      %s626 = ssub.s32 %s9, 2
      // Predicated region
      $region41: #{first_conv2d_forward.1} parent=39 // pred_check
        %p627 = pneg %p122
      $region42: #{first_conv2d_forward.1} parent=39 // pred_check_branch
        %629 = sbr.rel (%p627) target = $region44
      $region43: #{first_conv2d_forward.1} parent=39 // pred_region
        %s630 = smul.u32 32, %s21
        %p631 = scmp.lt.s32.totalorder %s20, 1
        %s632 = scalar_select %p631, %s20, 1
        %p633 = scmp.lt.s32.totalorder %s630, 31
        %s634 = scalar_select %p633, %s630, 31
        %s635 = smul.addr %s632, 32
        %s636 = sadd.s32 %s634, %s635
        %s637 = smul.addr %s636, 8
        %s638 = scalar_lea.vmem %s3, %s637
      $region44: #{first_conv2d_forward.1} parent=39 // pred_fallthru
        _
    $region40: #{first_conv2d_forward.1} parent=5 // pred_fallthru
      _
  $region6: #{first_conv2d_forward.1} parent=0 // loop_footer
    %s13 = sadd.s32 1, %s9
  $region7: #{first_conv2d_forward.1} parent=0 // loop_footer_branch
    %8 = sbr.rel target = $region3
  $region8: #{first_conv2d_forward.1} parent=0 // loop_exit
    _

</llo_original>
